<compile_context>
chip_gen: v6e
topology: v6e:2x2x1
jax: 0.10.0
libtpu: 0.0.40
codegen_flags: <defaults>
</compile_context>

<pallas_src>
import functools

import jax
import jax.numpy as jnp
from jax.experimental import pallas as pl
from jax.experimental.pallas import tpu as pltpu


# ----------------------------------------------------------------------------
# In-kernel helpers (traced inside kernels).
# ----------------------------------------------------------------------------
def _pad_hw_zero(x):
    """x: (C, H, W) -> (C, H+2, W+2) with a zero ring, built functionally in VMEM."""
    C, H, W = x.shape
    zc = jnp.zeros((C, H, 1), x.dtype)
    xw = jnp.concatenate([zc, x, zc], axis=2)          # pad width (lane dim)
    zr = jnp.zeros((C, 1, W + 2), x.dtype)
    return jnp.concatenate([zr, xw, zr], axis=1)       # pad height (sublane dim)


def _im2col_3x3(xp, H, W):
    """xp: (C, H+2, W+2) -> patch matrix (9*C, H*W), tap-major / channel-minor rows."""
    C = xp.shape[0]
    taps = [xp[:, dy:dy + H, dx:dx + W] for dy in range(3) for dx in range(3)]
    return jnp.concatenate(taps, axis=0).reshape(9 * C, H * W)


def _resize_bilinear(x, wh, wwt, C, Hi, Wi, Ho, Wo):
    """x: (C, Hi, Wi) -> (C, Ho, Wo); separable bilinear as two MXU contractions."""
    # width resize: one big 2D matmul with C*Hi rows
    xw = jnp.dot(x.reshape(C * Hi, Wi), wwt,
                 preferred_element_type=jnp.float32).reshape(C, Hi, Wo)
    # height resize: batched matmul over channels
    whb = jnp.broadcast_to(wh, (C, Ho, Hi))
    return jax.lax.dot_general(whb, xw, (((2,), (1,)), ((0,), (0,))),
                               preferred_element_type=jnp.float32)   # (C, Ho, Wo)


# ----------------------------------------------------------------------------
# Kernel A: backbone 3x3 conv (stride 1, zero pad) + ReLU.
# Emits pre-activation ("additional") and post-ReLU features, both (C, H*W) lane-dense.
# ----------------------------------------------------------------------------
def _conv3x3_relu_kernel(x_ref, w_ref, pre_ref, act_ref, *, H, W):
    xp = _pad_hw_zero(x_ref[0])                        # (Cin, H+2, W+2)
    patches = _im2col_3x3(xp, H, W)                    # (9*Cin, H*W)
    out = jnp.dot(w_ref[...], patches,                 # single MXU pass, K = 9*Cin
                  preferred_element_type=jnp.float32)  # (Cout, H*W)
    pre_ref[0] = out.astype(pre_ref.dtype)
    act_ref[0] = jnp.maximum(out, 0.0).astype(act_ref.dtype)


def conv3x3_relu(x_nchw, w_torch):
    """x: (N, Cin, H, W); w: (Cout, Cin, 3, 3). Returns (act, pre) as (N, Cout, H*W)."""
    n, cin, H, W = x_nchw.shape
    cout = w_torch.shape[0]
    wmat = jnp.transpose(w_torch, (0, 2, 3, 1)).reshape(cout, 9 * cin)

    kern = functools.partial(_conv3x3_relu_kernel, H=H, W=W)
    pre, act = pl.pallas_call(
        kern,
        out_shape=(jax.ShapeDtypeStruct((n, cout, H * W), jnp.float32),
                   jax.ShapeDtypeStruct((n, cout, H * W), jnp.float32)),
        grid=(n,),
        in_specs=[
            pl.BlockSpec((1, cin, H, W), lambda i: (i, 0, 0, 0)),
            pl.BlockSpec((cout, 9 * cin), lambda i: (0, 0)),
        ],
        out_specs=(
            pl.BlockSpec((1, cout, H * W), lambda i: (i, 0, 0)),
            pl.BlockSpec((1, cout, H * W), lambda i: (i, 0, 0)),
        ),
        compiler_params=pltpu.CompilerParams(dimension_semantics=("parallel",)),
    )(x_nchw, wmat)
    return act, pre


# ----------------------------------------------------------------------------
# Kernel B: fused head = bilinear upsample -> BN (folded) -> ReLU -> 3x3 conv.
# One pallas_call per batch element; the upsampled feature map never touches HBM.
# ----------------------------------------------------------------------------
def _head_kernel(x_ref, wh_ref, wwt_ref, scale_ref, shift_ref, w_ref, out_ref,
                 *, C, Hf, Wf, Ho, Wo):
    x = x_ref[0]                                       # (C, Hf, Wf)
    feat = _resize_bilinear(x, wh_ref[...], wwt_ref[...], C, Hf, Wf, Ho, Wo)
    y = jnp.maximum(feat * scale_ref[...] + shift_ref[...], 0.0)   # BN + ReLU
    patches = _im2col_3x3(_pad_hw_zero(y), Ho, Wo)     # (9*C, Ho*Wo)
    out_ref[0] = jnp.dot(w_ref[...], patches,
                         preferred_element_type=jnp.float32).astype(out_ref.dtype)


def head_upsample_bn_relu_conv(feat_flat, feat_hw, target_size,
                               gamma, beta, mean, var, w_torch, eps=1e-5):
    """feat_flat: (N, C, Hf*Wf). Returns logits (N, num_classes, Ho*Wo)."""
    n, C, _ = feat_flat.shape
    Hf, Wf = feat_hw
    Ho, Wo = target_size
    nc = w_torch.shape[0]

    x = feat_flat.reshape(n, C, Hf, Wf)                # free metadata reshape in HBM
    wh = _bilinear_matrix(Ho, Hf)
    wwt = _bilinear_matrix(Wo, Wf).T
    inv = 1.0 / jnp.sqrt(var + eps)
    scale = (gamma * inv).reshape(C, 1, 1)
    shift = (beta - mean * gamma * inv).reshape(C, 1, 1)
    wmat = jnp.transpose(w_torch, (0, 2, 3, 1)).reshape(nc, 9 * C)

    kern = functools.partial(_head_kernel, C=C, Hf=Hf, Wf=Wf, Ho=Ho, Wo=Wo)
    return pl.pallas_call(
        kern,
        out_shape=jax.ShapeDtypeStruct((n, nc, Ho * Wo), jnp.float32),
        grid=(n,),
        in_specs=[
            pl.BlockSpec((1, C, Hf, Wf), lambda i: (i, 0, 0, 0)),
            pl.BlockSpec((Ho, Hf), lambda i: (0, 0)),
            pl.BlockSpec((Wf, Wo), lambda i: (0, 0)),
            pl.BlockSpec((C, 1, 1), lambda i: (0, 0, 0)),
            pl.BlockSpec((C, 1, 1), lambda i: (0, 0, 0)),
            pl.BlockSpec((nc, 9 * C), lambda i: (0, 0)),
        ],
        out_specs=pl.BlockSpec((1, nc, Ho * Wo), lambda i: (i, 0, 0)),
        compiler_params=pltpu.CompilerParams(dimension_semantics=("parallel",)),
    )(x, wh, wwt, scale, shift, wmat)


# ----------------------------------------------------------------------------
# Kernel C: standalone bilinear upsample (align_corners=False), grid=(n,),
# all channels batched inside one grid step.
# ----------------------------------------------------------------------------
def _upsample_kernel(x_ref, wh_ref, wwt_ref, out_ref, *, C, Hi, Wi, Ho, Wo):
    y = _resize_bilinear(x_ref[0], wh_ref[...], wwt_ref[...], C, Hi, Wi, Ho, Wo)
    out_ref[0] = y.reshape(C, Ho * Wo).astype(out_ref.dtype)


def _bilinear_matrix(out_size, in_size):
    """Row-stochastic interp matrix matching F.interpolate(bilinear, align_corners=False)."""
    i = jnp.arange(out_size, dtype=jnp.float32)
    src = jnp.clip((i + 0.5) * (in_size / out_size) - 0.5, 0.0, float(in_size - 1))
    lo = jnp.floor(src).astype(jnp.int32)
    hi = jnp.minimum(lo + 1, in_size - 1)
    frac = src - lo.astype(jnp.float32)
    m = jnp.zeros((out_size, in_size), jnp.float32)
    m = m.at[jnp.arange(out_size), lo].add(1.0 - frac)
    m = m.at[jnp.arange(out_size), hi].add(frac)
    return m


def upsample_flat(x_flat, in_hw, out_hw):
    """x_flat: (N, C, Hi*Wi) -> (N, C, Ho*Wo)."""
    n, C, _ = x_flat.shape
    Hi, Wi = in_hw
    Ho, Wo = out_hw
    x = x_flat.reshape(n, C, Hi, Wi)
    wh = _bilinear_matrix(Ho, Hi)
    wwt = _bilinear_matrix(Wo, Wi).T

    kern = functools.partial(_upsample_kernel, C=C, Hi=Hi, Wi=Wi, Ho=Ho, Wo=Wo)
    return pl.pallas_call(
        kern,
        out_shape=jax.ShapeDtypeStruct((n, C, Ho * Wo), jnp.float32),
        grid=(n,),
        in_specs=[
            pl.BlockSpec((1, C, Hi, Wi), lambda i: (i, 0, 0, 0)),
            pl.BlockSpec((Ho, Hi), lambda i: (0, 0)),
            pl.BlockSpec((Wi, Wo), lambda i: (0, 0)),
        ],
        out_specs=pl.BlockSpec((1, C, Ho * Wo), lambda i: (i, 0, 0)),
        compiler_params=pltpu.CompilerParams(dimension_semantics=("parallel",)),
    )(x, wh, wwt)


# ----------------------------------------------------------------------------
# SemsegModel equivalent
# ----------------------------------------------------------------------------
class SemsegModelPallas:
    def __init__(self, key, in_channels=3, num_features=8, num_classes=5):
        k1, k2, k3, k4, k5, k6 = jax.random.split(key, 6)
        # synthetic backbone: 3x3 conv(in_channels -> num_features) + ReLU
        self.backbone_w = 0.1 * jax.random.normal(
            k1, (num_features, in_channels, 3, 3), jnp.float32)
        # self.logits = _BNReluConv(num_features, num_classes, batch_norm=True)
        self.logits_w = 0.1 * jax.random.normal(
            k2, (num_classes, num_features, 3, 3), jnp.float32)
        self.bn_gamma = 1.0 + 0.1 * jax.random.normal(k3, (num_features,), jnp.float32)
        self.bn_beta = 0.1 * jax.random.normal(k4, (num_features,), jnp.float32)
        self.bn_mean = 0.1 * jax.random.normal(k5, (num_features,), jnp.float32)
        self.bn_var = jnp.abs(jax.random.normal(k6, (num_features,), jnp.float32)) + 0.5
        self.num_features = num_features
        self.num_classes = num_classes

    def backbone(self, p):
        n, _, H, W = p.shape
        act_flat, pre_flat = conv3x3_relu(p, self.backbone_w)
        additional = pre_flat.reshape(n, self.num_features, H, W)   # NCHW, free reshape
        return act_flat, (H, W), additional

    def forward(self, pyramid, target_size, image_size):
        outs = [self.backbone(p) for p in pyramid]
        feats = [o[0] for o in outs]
        feat_hw = [o[1] for o in outs]
        additional = [o[2] for o in outs]

        # The reference model only has a valid path for a single-level pyramid
        # (multi-level yields features=None and crashes in self.logits).
        # TODO(synk): multi-level pyramid fusion is not implemented (matches reference).
        assert len(pyramid) == 1, "only single-level pyramids are supported"

        # Fused: upsample(features, target_size) -> BN -> ReLU -> 3x3 conv (logits).
        logits_flat = head_upsample_bn_relu_conv(
            feats[0], feat_hw[0], target_size,
            self.bn_gamma, self.bn_beta, self.bn_mean, self.bn_var, self.logits_w)

        up_flat = upsample_flat(logits_flat, target_size, image_size)
        n = pyramid[0].shape[0]
        logits_up = up_flat.reshape(n, self.num_classes, image_size[0], image_size[1])
        return logits_up, additional[0]


if __name__ == "__main__":
    key = jax.random.PRNGKey(0)
    k_model, k_data = jax.random.split(key)

    model = SemsegModelPallas(k_model, in_channels=3, num_features=8, num_classes=5)

    # single-level pyramid, NCHW
    x = jax.random.normal(k_data, (2, 3, 8, 8), jnp.float32)
    pyramid = [x]
    target_size = (12, 12)   # feature-level upsample target
    image_size = (16, 16)    # final logits resolution

    logits_up, additional0 = model.forward(pyramid, target_size, image_size)
    jax.block_until_ready((logits_up, additional0))

    assert logits_up.shape == (2, 5, 16, 16)
    assert additional0.shape == (2, 8, 8, 8)
    print("KERNEL_OK")
</pallas_src>

<mosaic_0001>
module attributes {stable_mosaic.version = 11 : i64} {
  func.func @_conv3x3_relu_kernel(%arg0: i32, %arg1: memref<1x3x8x8xf32, #tpu.memory_space<vmem>>, %arg2: memref<8x27xf32, #tpu.memory_space<vmem>>, %arg3: memref<1x8x64xf32, #tpu.memory_space<vmem>>, %arg4: memref<1x8x64xf32, #tpu.memory_space<vmem>>) attributes {dimension_semantics = [#tpu.dimension_semantics<parallel>], iteration_bounds = array<i64: 2>, scalar_prefetch = 0 : i64, scratch_operands = 0 : i64, tpu.core_type = #tpu.core_type<tc>, window_params = [{transform_indices = @transform_0, window_bounds = array<i64: 1, 3, 8, 8>}, {pipeline_mode = #tpu.pipeline_mode<synchronous>, transform_indices = @transform_1, window_bounds = array<i64: 8, 27>}, {transform_indices = @transform_2, window_bounds = array<i64: 1, 8, 64>}, {transform_indices = @transform_3, window_bounds = array<i64: 1, 8, 64>}]} {
    %c0 = arith.constant 0 : index
    %c0_0 = arith.constant 0 : index
    %c0_1 = arith.constant 0 : index
    %c0_2 = arith.constant 0 : index
    %0 = vector.load %arg1[%c0, %c0_0, %c0_1, %c0_2] : memref<1x3x8x8xf32, #tpu.memory_space<vmem>>, vector<1x3x8x8xf32>
    %1 = vector.shape_cast %0 : vector<1x3x8x8xf32> to vector<3x8x8xf32>
    %cst = arith.constant 0.000000e+00 : f32
    %2 = vector.broadcast %cst : f32 to vector<3x8x1xf32>
    %3 = tpu.concatenate %2, %1, %2 in 2 : vector<3x8x1xf32>, vector<3x8x8xf32>, vector<3x8x1xf32> -> vector<3x8x10xf32>
    %cst_3 = arith.constant 0.000000e+00 : f32
    %4 = vector.broadcast %cst_3 : f32 to vector<3x1x10xf32>
    %5 = tpu.concatenate %4, %3, %4 in 1 : vector<3x1x10xf32>, vector<3x8x10xf32>, vector<3x1x10xf32> -> vector<3x10x10xf32>
    %6 = vector.extract_strided_slice %5 {offsets = [0, 0, 0], sizes = [3, 8, 8], strides = [1, 1, 1]} : vector<3x10x10xf32> to vector<3x8x8xf32>
    %7 = vector.extract_strided_slice %5 {offsets = [0, 0, 1], sizes = [3, 8, 8], strides = [1, 1, 1]} : vector<3x10x10xf32> to vector<3x8x8xf32>
    %8 = vector.extract_strided_slice %5 {offsets = [0, 0, 2], sizes = [3, 8, 8], strides = [1, 1, 1]} : vector<3x10x10xf32> to vector<3x8x8xf32>
    %9 = vector.extract_strided_slice %5 {offsets = [0, 1, 0], sizes = [3, 8, 8], strides = [1, 1, 1]} : vector<3x10x10xf32> to vector<3x8x8xf32>
    %10 = vector.extract_strided_slice %5 {offsets = [0, 1, 1], sizes = [3, 8, 8], strides = [1, 1, 1]} : vector<3x10x10xf32> to vector<3x8x8xf32>
    %11 = vector.extract_strided_slice %5 {offsets = [0, 1, 2], sizes = [3, 8, 8], strides = [1, 1, 1]} : vector<3x10x10xf32> to vector<3x8x8xf32>
    %12 = vector.extract_strided_slice %5 {offsets = [0, 2, 0], sizes = [3, 8, 8], strides = [1, 1, 1]} : vector<3x10x10xf32> to vector<3x8x8xf32>
    %13 = vector.extract_strided_slice %5 {offsets = [0, 2, 1], sizes = [3, 8, 8], strides = [1, 1, 1]} : vector<3x10x10xf32> to vector<3x8x8xf32>
    %14 = vector.extract_strided_slice %5 {offsets = [0, 2, 2], sizes = [3, 8, 8], strides = [1, 1, 1]} : vector<3x10x10xf32> to vector<3x8x8xf32>
    %15 = tpu.concatenate %6, %7, %8, %9, %10, %11, %12, %13, %14 in 0 : vector<3x8x8xf32>, vector<3x8x8xf32>, vector<3x8x8xf32>, vector<3x8x8xf32>, vector<3x8x8xf32>, vector<3x8x8xf32>, vector<3x8x8xf32>, vector<3x8x8xf32>, vector<3x8x8xf32> -> vector<27x8x8xf32>
    %16 = vector.shape_cast %15 : vector<27x8x8xf32> to vector<27x64xf32>
    %c0_4 = arith.constant 0 : index
    %c0_5 = arith.constant 0 : index
    %17 = vector.load %arg2[%c0_4, %c0_5] : memref<8x27xf32, #tpu.memory_space<vmem>>, vector<8x27xf32>
    %cst_6 = arith.constant dense<0.000000e+00> : vector<8x64xf32>
    %18 = tpu.matmul %17, %16, %cst_6 {dimension_numbers = #tpu.dot_dimension_numbers<[1], [0], [0], [1], [0, 0, 1, 1], [], []>} : vector<8x27xf32>, vector<27x64xf32>, vector<8x64xf32> -> vector<8x64xf32>
    %c0_7 = arith.constant 0 : index
    %c0_8 = arith.constant 0 : index
    %c0_9 = arith.constant 0 : index
    %19 = vector.load %arg3[%c0_7, %c0_8, %c0_9] : memref<1x8x64xf32, #tpu.memory_space<vmem>>, vector<1x8x64xf32>
    %20 = vector.shape_cast %19 : vector<1x8x64xf32> to vector<8x64xf32>
    %21 = vector.shape_cast %18 : vector<8x64xf32> to vector<1x8x64xf32>
    tpu.vector_store %arg3[%c0_7, %c0_8, %c0_9], %21 {strides = array<i32>} : memref<1x8x64xf32, #tpu.memory_space<vmem>>, vector<1x8x64xf32>,
    %cst_10 = arith.constant 0.000000e+00 : f32
    %22 = vector.broadcast %cst_10 : f32 to vector<8x64xf32>
    %23 = arith.maximumf %18, %22 : vector<8x64xf32>
    %c0_11 = arith.constant 0 : index
    %c0_12 = arith.constant 0 : index
    %c0_13 = arith.constant 0 : index
    %24 = vector.load %arg4[%c0_11, %c0_12, %c0_13] : memref<1x8x64xf32, #tpu.memory_space<vmem>>, vector<1x8x64xf32>
    %25 = vector.shape_cast %24 : vector<1x8x64xf32> to vector<8x64xf32>
    %26 = vector.shape_cast %23 : vector<8x64xf32> to vector<1x8x64xf32>
    tpu.vector_store %arg4[%c0_11, %c0_12, %c0_13], %26 {strides = array<i32>} : memref<1x8x64xf32, #tpu.memory_space<vmem>>, vector<1x8x64xf32>,
    return
  }
  func.func @transform_0(%arg0: i32) -> (i32, i32, i32, i32) {
    %c0_i32 = arith.constant 0 : i32
    %c0_i32_0 = arith.constant 0 : i32
    %c0_i32_1 = arith.constant 0 : i32
    %c0_i32_2 = arith.constant 0 : i32
    return %arg0, %c0_i32, %c0_i32_0, %c0_i32_1 : i32, i32, i32, i32
  }
  func.func @transform_1(%arg0: i32) -> (i32, i32) {
    %c0_i32 = arith.constant 0 : i32
    %c0_i32_0 = arith.constant 0 : i32
    %c0_i32_1 = arith.constant 0 : i32
    return %c0_i32, %c0_i32_0 : i32, i32
  }
  func.func @transform_2(%arg0: i32) -> (i32, i32, i32) {
    %c0_i32 = arith.constant 0 : i32
    %c0_i32_0 = arith.constant 0 : i32
    %c0_i32_1 = arith.constant 0 : i32
    return %arg0, %c0_i32, %c0_i32_0 : i32, i32, i32
  }
  func.func @transform_3(%arg0: i32) -> (i32, i32, i32) {
    %c0_i32 = arith.constant 0 : i32
    %c0_i32_0 = arith.constant 0 : i32
    %c0_i32_1 = arith.constant 0 : i32
    return %arg0, %c0_i32, %c0_i32_0 : i32, i32, i32
  }
}

</mosaic_0001>

<llo_original>
// kernel: tpu_custom_call.1
$region0: #{tpu_custom_call.1}
  #allocation0 [shape = 'u32[]', space=smem, size = 0x4, offset = 0x4, fixed_abs, tag = 'smem constant byte address 0x4 - core index']
  #allocation1 [shape = 'u32[144,128]{1,0:T(1,128)}', space=vmem, size = 0x12000, scoped, tag = 'internal scratch']
  %s0 = inlined_call_operand.hbm [shape: f32[2,3,8,8], index: 0, kind: input, shape index: {}]
  %s1 = inlined_call_operand.hbm [shape: f32[8,27], index: 1, kind: input, shape index: {}]
  %s2 = inlined_call_operand.hbm [shape: f32[2,8,64], index: 2, kind: output, shape index: {0}]
  %s3 = inlined_call_operand.hbm [shape: f32[2,8,64], index: 3, kind: output, shape index: {1}]
  %4 = xla_tuple %s2, %s3
  %s5 = sld [smem:[#allocation0]]
  $region57: #{tpu_custom_call.1} parent=0
    _
  %s7 = ssub.s32 1, %s5
  %s8 = scalar_select 0, %s7, %s5
  $region1: #{tpu_custom_call.1} parent=0
    #allocation2 [shape = 'u8[24576]{0}', space=vmem, size = 0x6000, scoped, tag = 'input window, operand 0']
    #allocation3 [shape = 's32[2]{0}', space=sflag, size = 0x8, scoped, tag = 'scoped memory for tpu_custom_call.1']
    #allocation4 [shape = 's32[2]{0}', space=sflag, size = 0x8, scoped, tag = 'scoped memory for tpu_custom_call.1']
    #allocation5 [shape = 'u8[4096]{0}', space=vmem, size = 0x1000, scoped, tag = 'input window, operand 1, single buffered']
    #allocation6 [shape = 's32[1]{0}', space=sflag, size = 0x4, scoped, tag = 'scoped memory for tpu_custom_call.1']
    #allocation7 [shape = 'u8[8192]{0}', space=vmem, size = 0x2000, scoped, tag = 'output window, operand 0']
    #allocation8 [shape = 'u8[8192]{0}', space=vmem, size = 0x2000, scoped, tag = 'output window, operand 1']
    #allocation9 [shape = 's32[2]{0}', space=sflag, size = 0x8, scoped, tag = 'scoped memory for tpu_custom_call.1']
    %9 = vsyncpa [#allocation3], 0
    %s10 = scalar_lea.sflag [#allocation3], 1
    %11 = vsyncpa %s10, 0
    %12 = vsyncpa [#allocation6], 0
    %13 = vsyncpa [#allocation4], 0
    %s14 = scalar_lea.sflag [#allocation4], 1
    %15 = vsyncpa %s14, 0
    %16 = vsyncpa [#allocation9], 0
    %s17 = scalar_lea.sflag [#allocation9], 1
    %18 = vsyncpa %s17, 0
    loop: start=0, step=1, limit=4
    $region2: #{tpu_custom_call.1} parent=1 // loop_pre_header
      _
    $region3: #{tpu_custom_call.1} parent=1 // loop_header
      %s20 = sphi 0, %s24
      %p21 = scmp.ge.s32.totalorder %s20, 4
      %s30 = sphi 0, %s32
      %s33 = sphi 0, %s30
      %s34 = sphi 0, %s33
      %s50 = sphi 0, %s34
      %s54 = sphi 0, %s54
      %s56 = sphi 0, %s54
      %s57 = sphi 0, %s56
      %s71 = sphi 0, %s57
      %s77 = sphi 0, %s79
      %s80 = sphi 0, %s77
      %s81 = sphi 0, %s80
      %s97 = sphi 0, %s81
      %s103 = sphi 0, %s105
      %s106 = sphi 0, %s103
      %s107 = sphi 0, %s106
      %s123 = sphi 0, %s107
    $region4: #{tpu_custom_call.1} parent=1 // loop_header_branch
      %23 = sbr.rel (%p21) target = $region8
    $region5: #{tpu_custom_call.1} parent=1 // loop_body
      %s25 = ssub.s32 %s20, 1
      %s26 = ssub.s32 %s20, 2
      %s27 = sadd.s32 %s20, 1
      %s28 = ssub.s32 %s20, %s27
      %p29 = scmp.eq.s32.totalorder %s28, 0
      %s31 = sadd.s32 %s30, 1
      %s32 = scalar_select %p29, %s30, %s31
      %p35 = pneg %p29
      %p36 = scmp.eq.s32.totalorder %s20, 1
      %p37 = por %p35, %p36
      %p38 = scmp.ne.s32.totalorder %s30, %s33
      %p39 = scmp.eq.s32.totalorder %s20, 0
      %p40 = por %p38, %p39
      %p41 = scmp.ne.s32.totalorder %s30, %s33
      %p42 = scmp.eq.s32.totalorder %s25, 1
      %p43 = por %p41, %p42
      %p44 = scmp.ne.s32.totalorder %s33, %s34
      %p45 = scmp.eq.s32.totalorder %s25, 0
      %p46 = por %p44, %p45
      %p47 = scmp.ne.s32.totalorder %s33, %s34
      %p48 = scmp.eq.s32.totalorder %s26, 1
      %p49 = por %p47, %p48
      %p51 = scmp.ne.s32.totalorder %s34, %s50
      %p52 = scmp.eq.s32.totalorder %s26, 0
      %p53 = por %p51, %p52
      %s55 = sadd.s32 %s54, 1
      %p58 = scmp.eq.s32.totalorder %s20, 1
      %p59 = scmp.ne.s32.totalorder %s54, %s56
      %p60 = scmp.eq.s32.totalorder %s20, 0
      %p61 = por %p59, %p60
      %p62 = scmp.ne.s32.totalorder %s54, %s56
      %p63 = scmp.eq.s32.totalorder %s25, 1
      %p64 = por %p62, %p63
      %p65 = scmp.ne.s32.totalorder %s56, %s57
      %p66 = scmp.eq.s32.totalorder %s25, 0
      %p67 = por %p65, %p66
      %p68 = scmp.ne.s32.totalorder %s56, %s57
      %p69 = scmp.eq.s32.totalorder %s26, 1
      %p70 = por %p68, %p69
      %p72 = scmp.ne.s32.totalorder %s57, %s71
      %p73 = scmp.eq.s32.totalorder %s26, 0
      %p74 = por %p72, %p73
      %s75 = ssub.s32 %s20, %s27
      %p76 = scmp.eq.s32.totalorder %s75, 0
      %s78 = sadd.s32 %s77, 1
      %s79 = scalar_select %p76, %s77, %s78
      %p82 = pneg %p76
      %p83 = scmp.eq.s32.totalorder %s20, 1
      %p84 = por %p82, %p83
      %p85 = scmp.ne.s32.totalorder %s77, %s80
      %p86 = scmp.eq.s32.totalorder %s20, 0
      %p87 = por %p85, %p86
      %p88 = scmp.ne.s32.totalorder %s77, %s80
      %p89 = scmp.eq.s32.totalorder %s25, 1
      %p90 = por %p88, %p89
      %p91 = scmp.ne.s32.totalorder %s80, %s81
      %p92 = scmp.eq.s32.totalorder %s25, 0
      %p93 = por %p91, %p92
      %p94 = scmp.ne.s32.totalorder %s80, %s81
      %p95 = scmp.eq.s32.totalorder %s26, 1
      %p96 = por %p94, %p95
      %p98 = scmp.ne.s32.totalorder %s81, %s97
      %p99 = scmp.eq.s32.totalorder %s26, 0
      %p100 = por %p98, %p99
      %s101 = ssub.s32 %s20, %s27
      %p102 = scmp.eq.s32.totalorder %s101, 0
      %s104 = sadd.s32 %s103, 1
      %s105 = scalar_select %p102, %s103, %s104
      %p108 = pneg %p102
      %p109 = scmp.eq.s32.totalorder %s20, 1
      %p110 = por %p108, %p109
      %p111 = scmp.ne.s32.totalorder %s103, %s106
      %p112 = scmp.eq.s32.totalorder %s20, 0
      %p113 = por %p111, %p112
      %p114 = scmp.ne.s32.totalorder %s103, %s106
      %p115 = scmp.eq.s32.totalorder %s25, 1
      %p116 = por %p114, %p115
      %p117 = scmp.ne.s32.totalorder %s106, %s107
      %p118 = scmp.eq.s32.totalorder %s25, 0
      %p119 = por %p117, %p118
      %p120 = scmp.ne.s32.totalorder %s106, %s107
      %p121 = scmp.eq.s32.totalorder %s26, 1
      %p122 = por %p120, %p121
      %p124 = scmp.ne.s32.totalorder %s107, %s123
      %p125 = scmp.eq.s32.totalorder %s26, 0
      %p126 = por %p124, %p125
      %p127 = scmp.le.s32.totalorder 1, %s20
      %p128 = scmp.lt.s32.totalorder %s20, 3
      %p129 = pnand %p127, %p128
      %p130 = pneg %p129
      // Predicated region
      $region9: #{tpu_custom_call.1} parent=5 // pred_check
        _
      $region10: #{tpu_custom_call.1} parent=5 // pred_check_branch
        %132 = sbr.rel (%p129) target = $region12
      $region11: #{tpu_custom_call.1} parent=5 // pred_region
        %s133 = ssub.s32 %s20, 1
        // Predicated region
        $region13: #{tpu_custom_call.1} parent=11 // pred_check
          %p134 = pneg %p67
        $region14: #{tpu_custom_call.1} parent=11 // pred_check_branch
          %136 = sbr.rel (%p134) target = $region16
        $region15: #{tpu_custom_call.1} parent=11 // pred_region
          %s138 = ssub.s32 128, 128
          %139 = vsyncadd [#allocation6], %s138
          %s141 = sshll.u32 [#allocation5], 4
          %s142 = int_to_ptr.vmem [resolvable:$true] %s141
          %144 = dma.hbm_to_vmem [thread:$0]  %s1, 128, %s142, [#allocation6]
        $region16: #{tpu_custom_call.1} parent=11 // pred_fallthru
          _
      $region12: #{tpu_custom_call.1} parent=5 // pred_fallthru
        _
      %p145 = scmp.lt.s32.totalorder %s20, 2
      // Predicated region
      $region17: #{tpu_custom_call.1} parent=5 // pred_check
        %p146 = pneg %p145
      $region18: #{tpu_custom_call.1} parent=5 // pred_check_branch
        %148 = sbr.rel (%p146) target = $region20
      $region19: #{tpu_custom_call.1} parent=5 // pred_region
        // Predicated region
        $region21: #{tpu_custom_call.1} parent=19 // pred_check
          %p149 = pneg %p40
        $region22: #{tpu_custom_call.1} parent=19 // pred_check_branch
          %151 = sbr.rel (%p149) target = $region24
        $region23: #{tpu_custom_call.1} parent=19 // pred_region
          %s152 = sand.u32 %s30, 1
          %s153 = scalar_lea.sflag [#allocation3], %s152
          %s154 = sand.u32 %s30, 1
          %s155 = smul.addr %s154, 24
          %s156 = scalar_lea.vmem [#allocation2], %s155
          %s158 = ssub.s32 384, 384
          %159 = vsyncadd %s153, %s158
          %s160 = smul.addr %s20, 3
          %s161 = smul.addr %s160, 128
          %s162 = scalar_lea.hbm %s0, %s161
          %s163 = sshll.u32 %s156, 4
          %s164 = int_to_ptr.vmem [resolvable:$true] %s163
          %169 = dma.hbm_to_vmem [thread:$0]  %s162, 384, %s164, %s153, 128, 128, 8
        $region24: #{tpu_custom_call.1} parent=19 // pred_fallthru
          _
      $region20: #{tpu_custom_call.1} parent=5 // pred_fallthru
        _
      %p170 = scmp.le.s32.totalorder 1, %s20
      %p171 = scmp.lt.s32.totalorder %s20, 3
      %p172 = pnand %p170, %p171
      %p173 = pneg %p172
      // Predicated region
      $region25: #{tpu_custom_call.1} parent=5 // pred_check
        _
      $region26: #{tpu_custom_call.1} parent=5 // pred_check_branch
        %175 = sbr.rel (%p172) target = $region28
      $region27: #{tpu_custom_call.1} parent=5 // pred_region
        %s176 = ssub.s32 %s20, 1
        %s177 = sand.u32 %s33, 1
        %s178 = scalar_lea.sflag [#allocation3], %s177
        %s179 = sand.u32 %s33, 1
        %s180 = smul.addr %s179, 24
        %s181 = scalar_lea.vmem [#allocation2], %s180
        // Predicated region
        $region29: #{tpu_custom_call.1} parent=27 // pred_check
          %p182 = pneg %p46
        $region30: #{tpu_custom_call.1} parent=27 // pred_check_branch
          %184 = sbr.rel (%p182) target = $region32
        $region31: #{tpu_custom_call.1} parent=27 // pred_region
          %185 = dma.done %s178, 384
        $region32: #{tpu_custom_call.1} parent=27 // pred_fallthru
          _
        // Predicated region
        $region33: #{tpu_custom_call.1} parent=27 // pred_check
          %p186 = pneg %p67
        $region34: #{tpu_custom_call.1} parent=27 // pred_check_branch
          %188 = sbr.rel (%p186) target = $region36
        $region35: #{tpu_custom_call.1} parent=27 // pred_region
          %189 = dma.done [#allocation6], 128
        $region36: #{tpu_custom_call.1} parent=27 // pred_fallthru
          _
        %s190 = sand.u32 %s33, 1
        %s191 = scalar_lea.sflag [#allocation3], %s190
        %s192 = sand.u32 %s33, 1
        %s193 = smul.addr %s192, 24
        %s194 = scalar_lea.vmem [#allocation2], %s193
        %p195 = pneg %p46
        %p196 = pneg %p43
        %p197 = pneg %p67
        %p198 = pneg %p64
        %p199 = pneg %p93
        %p200 = pneg %p90
        %s201 = sand.u32 %s80, 1
        %s202 = scalar_lea.sflag [#allocation4], %s201
        %s203 = sand.u32 %s80, 1
        %s204 = smul.addr %s203, 8
        %s205 = scalar_lea.vmem [#allocation7], %s204
        %p206 = pneg %p119
        %p207 = pneg %p116
        %s208 = sand.u32 %s106, 1
        %s209 = scalar_lea.sflag [#allocation9], %s208
        %s210 = sand.u32 %s106, 1
        %s211 = smul.addr %s210, 8
        %s212 = scalar_lea.vmem [#allocation8], %s211
        %v213 = vld [vmem:[%s181] sm:$0xff]
        %v214 = vld [vmem:[%s181 + $0x8] sm:$0xff]
        %v215 = vld [vmem:[%s181 + $0x10] sm:$0xff]
        %219 = vrot.lane.b32.xlu0 %v213, 1
        %v220 = vpop.permute.xlu0 %219
        %221 = vrot.lane.b32.xlu0 %v214, 1
        %v222 = vpop.permute.xlu0 %221
        %223 = vrot.lane.b32.xlu0 %v215, 1
        %v224 = vpop.permute.xlu0 %223
        %vm228 = vcmask 7168
        %v229 = vsel %vm228, 0.0, %v220
        %v230 = vsel %vm228, 0.0, %v222
        %v231 = vsel %vm228, 0.0, %v224
        %vm232 = vcmask 72704
        %v233 = vsel %vm232, %v229, 0.0
        %v234 = vsel %vm232, %v230, 0.0
        %v235 = vsel %vm232, %v231, 0.0
        %v239 = vrot.slane %v233, 7
        %v240 = vrot.slane %v234, 7
        %v241 = vrot.slane %v235, 7
        %vm245 = vcmask 1040384
        %v246 = vsel %vm245, 0.0, %v239
        %v247 = vsel %vm245, 0.0, %v240
        %v248 = vsel %vm245, 0.0, %v241
        %v249 = vsel %vm245, %v239, 0.0
        %v250 = vsel %vm245, %v240, 0.0
        %v251 = vsel %vm245, %v241, 0.0
        %255 = vrot.lane.b32.xlu0 %v246, 127
        %v256 = vpop.permute.xlu0 %255
        %257 = vrot.lane.b32.xlu0 %v247, 127
        %v258 = vpop.permute.xlu0 %257
        %259 = vrot.lane.b32.xlu0 %v248, 127
        %v260 = vpop.permute.xlu0 %259
        %264 = vrot.lane.b32.xlu0 %v246, 126
        %v265 = vpop.permute.xlu0 %264
        %266 = vrot.lane.b32.xlu0 %v247, 126
        %v267 = vpop.permute.xlu0 %266
        %268 = vrot.lane.b32.xlu0 %v248, 126
        %v269 = vpop.permute.xlu0 %268
        %vm276 = vcmask 1046528
        %v277 = vrot.slane %v246, 1
        %v278 = vrot.slane %v249, 1
        %v279 = vsel %vm276, %v277, %v278
        %v280 = vrot.slane %v247, 1
        %v281 = vrot.slane %v250, 1
        %v282 = vsel %vm276, %v280, %v281
        %v283 = vrot.slane %v248, 1
        %v284 = vrot.slane %v251, 1
        %v285 = vsel %vm276, %v283, %v284
        %289 = vrot.lane.b32.xlu0 %v279, 127
        %v290 = vpop.permute.xlu0 %289
        %291 = vrot.lane.b32.xlu0 %v282, 127
        %v292 = vpop.permute.xlu0 %291
        %293 = vrot.lane.b32.xlu0 %v285, 127
        %v294 = vpop.permute.xlu0 %293
        %298 = vrot.lane.b32.xlu0 %v279, 126
        %v299 = vpop.permute.xlu0 %298
        %300 = vrot.lane.b32.xlu0 %v282, 126
        %v301 = vpop.permute.xlu0 %300
        %302 = vrot.lane.b32.xlu0 %v285, 126
        %v303 = vpop.permute.xlu0 %302
        %vm307 = vcmask 1045504
        %v308 = vrot.slane %v246, 2
        %v309 = vrot.slane %v249, 2
        %v310 = vsel %vm307, %v308, %v309
        %v311 = vrot.slane %v247, 2
        %v312 = vrot.slane %v250, 2
        %v313 = vsel %vm307, %v311, %v312
        %v314 = vrot.slane %v248, 2
        %v315 = vrot.slane %v251, 2
        %v316 = vsel %vm307, %v314, %v315
        %320 = vrot.lane.b32.xlu0 %v310, 127
        %v321 = vpop.permute.xlu0 %320
        %322 = vrot.lane.b32.xlu0 %v313, 127
        %v323 = vpop.permute.xlu0 %322
        %324 = vrot.lane.b32.xlu0 %v316, 127
        %v325 = vpop.permute.xlu0 %324
        %329 = vrot.lane.b32.xlu0 %v310, 126
        %v330 = vpop.permute.xlu0 %329
        %331 = vrot.lane.b32.xlu0 %v313, 126
        %v332 = vpop.permute.xlu0 %331
        %333 = vrot.lane.b32.xlu0 %v316, 126
        %v334 = vpop.permute.xlu0 %333
        %v338 = vcombine.low %v246, %v248
        %v339 = vcombine.high %v246, %v248
        %v341 = vunpack.c.l.s4 1983009808
        %v342 = vunpack.c.0.s8 %v341
        %v343 = vlaneseq
        %v344 = vshrl.u32 %v343, 7
        %v345 = vsub.s32 %v342, %v344
        %v346 = vrot.slane %v338, %v345
        %v348 = vunpack.c.l.s4 1983009808
        %v349 = vunpack.c.0.s8 %v348
        %v350 = vlaneseq
        %v351 = vshrl.u32 %v350, 7
        %v352 = vsub.s32 %v349, %v351
        %v353 = vrot.slane %v339, %v352
        %v354 = vcombine.low %v247, %v256
        %v355 = vcombine.high %v247, %v256
        %v357 = vunpack.c.l.s4 1983009808
        %v358 = vunpack.c.0.s8 %v357
        %v359 = vlaneseq
        %v360 = vshrl.u32 %v359, 7
        %v361 = vsub.s32 %v358, %v360
        %v362 = vrot.slane %v354, %v361
        %v364 = vunpack.c.l.s4 1983009808
        %v365 = vunpack.c.0.s8 %v364
        %v366 = vlaneseq
        %v367 = vshrl.u32 %v366, 7
        %v368 = vsub.s32 %v365, %v367
        %v369 = vrot.slane %v355, %v368
        %v370 = vcombine.low %v258, %v265
        %v371 = vcombine.high %v258, %v265
        %v373 = vunpack.c.l.s4 1983009808
        %v374 = vunpack.c.0.s8 %v373
        %v375 = vlaneseq
        %v376 = vshrl.u32 %v375, 7
        %v377 = vsub.s32 %v374, %v376
        %v378 = vrot.slane %v370, %v377
        %v380 = vunpack.c.l.s4 1983009808
        %v381 = vunpack.c.0.s8 %v380
        %v382 = vlaneseq
        %v383 = vshrl.u32 %v382, 7
        %v384 = vsub.s32 %v381, %v383
        %v385 = vrot.slane %v371, %v384
        %v386 = vcombine.low %v260, %v267
        %v387 = vcombine.high %v260, %v267
        %v389 = vunpack.c.l.s4 1983009808
        %v390 = vunpack.c.0.s8 %v389
        %v391 = vlaneseq
        %v392 = vshrl.u32 %v391, 7
        %v393 = vsub.s32 %v390, %v392
        %v394 = vrot.slane %v386, %v393
        %v396 = vunpack.c.l.s4 1983009808
        %v397 = vunpack.c.0.s8 %v396
        %v398 = vlaneseq
        %v399 = vshrl.u32 %v398, 7
        %v400 = vsub.s32 %v397, %v399
        %v401 = vrot.slane %v387, %v400
        %v402 = vcombine.low %v346, %v362
        %v403 = vcombine.high %v346, %v362
        %v405 = vunpack.c.l.s4 1934713408
        %v406 = vunpack.c.0.s8 %v405
        %v407 = vlaneseq
        %v408 = vshrl.u32 %v407, 7
        %v409 = vsub.s32 %v406, %v408
        %v410 = vrot.slane %v402, %v409
        %v412 = vunpack.c.l.s4 1934713408
        %v413 = vunpack.c.0.s8 %v412
        %v414 = vlaneseq
        %v415 = vshrl.u32 %v414, 7
        %v416 = vsub.s32 %v413, %v415
        %v417 = vrot.slane %v403, %v416
        %v418 = vcombine.low %v353, %v369
        %v419 = vcombine.high %v353, %v369
        %v421 = vunpack.c.l.s4 1934713408
        %v422 = vunpack.c.0.s8 %v421
        %v423 = vlaneseq
        %v424 = vshrl.u32 %v423, 7
        %v425 = vsub.s32 %v422, %v424
        %v426 = vrot.slane %v418, %v425
        %v428 = vunpack.c.l.s4 1934713408
        %v429 = vunpack.c.0.s8 %v428
        %v430 = vlaneseq
        %v431 = vshrl.u32 %v430, 7
        %v432 = vsub.s32 %v429, %v431
        %v433 = vrot.slane %v419, %v432
        %v434 = vcombine.low %v378, %v394
        %v435 = vcombine.high %v378, %v394
        %v437 = vunpack.c.l.s4 1934713408
        %v438 = vunpack.c.0.s8 %v437
        %v439 = vlaneseq
        %v440 = vshrl.u32 %v439, 7
        %v441 = vsub.s32 %v438, %v440
        %v442 = vrot.slane %v434, %v441
        %v444 = vunpack.c.l.s4 1934713408
        %v445 = vunpack.c.0.s8 %v444
        %v446 = vlaneseq
        %v447 = vshrl.u32 %v446, 7
        %v448 = vsub.s32 %v445, %v447
        %v449 = vrot.slane %v435, %v448
        %v450 = vcombine.low %v385, %v401
        %v451 = vcombine.high %v385, %v401
        %v453 = vunpack.c.l.s4 1934713408
        %v454 = vunpack.c.0.s8 %v453
        %v455 = vlaneseq
        %v456 = vshrl.u32 %v455, 7
        %v457 = vsub.s32 %v454, %v456
        %v458 = vrot.slane %v450, %v457
        %v460 = vunpack.c.l.s4 1934713408
        %v461 = vunpack.c.0.s8 %v460
        %v462 = vlaneseq
        %v463 = vshrl.u32 %v462, 7
        %v464 = vsub.s32 %v461, %v463
        %v465 = vrot.slane %v451, %v464
        %v466 = vcombine.low %v410, %v442
        %v467 = vcombine.high %v410, %v442
        %v468 = vcombine.low %v417, %v449
        %v469 = vcombine.high %v417, %v449
        %v470 = vcombine.low %v426, %v458
        %v471 = vcombine.high %v426, %v458
        %v472 = vcombine.low %v433, %v465
        %v473 = vcombine.high %v433, %v465
        %v474 = vcombine.low %v269, %v282
        %v475 = vcombine.high %v269, %v282
        %v477 = vunpack.c.l.s4 1983009808
        %v478 = vunpack.c.0.s8 %v477
        %v479 = vlaneseq
        %v480 = vshrl.u32 %v479, 7
        %v481 = vsub.s32 %v478, %v480
        %v482 = vrot.slane %v474, %v481
        %v484 = vunpack.c.l.s4 1983009808
        %v485 = vunpack.c.0.s8 %v484
        %v486 = vlaneseq
        %v487 = vshrl.u32 %v486, 7
        %v488 = vsub.s32 %v485, %v487
        %v489 = vrot.slane %v475, %v488
        %v490 = vcombine.low %v279, %v285
        %v491 = vcombine.high %v279, %v285
        %v493 = vunpack.c.l.s4 1983009808
        %v494 = vunpack.c.0.s8 %v493
        %v495 = vlaneseq
        %v496 = vshrl.u32 %v495, 7
        %v497 = vsub.s32 %v494, %v496
        %v498 = vrot.slane %v490, %v497
        %v500 = vunpack.c.l.s4 1983009808
        %v501 = vunpack.c.0.s8 %v500
        %v502 = vlaneseq
        %v503 = vshrl.u32 %v502, 7
        %v504 = vsub.s32 %v501, %v503
        %v505 = vrot.slane %v491, %v504
        %v506 = vcombine.low %v290, %v294
        %v507 = vcombine.high %v290, %v294
        %v509 = vunpack.c.l.s4 1983009808
        %v510 = vunpack.c.0.s8 %v509
        %v511 = vlaneseq
        %v512 = vshrl.u32 %v511, 7
        %v513 = vsub.s32 %v510, %v512
        %v514 = vrot.slane %v506, %v513
        %v516 = vunpack.c.l.s4 1983009808
        %v517 = vunpack.c.0.s8 %v516
        %v518 = vlaneseq
        %v519 = vshrl.u32 %v518, 7
        %v520 = vsub.s32 %v517, %v519
        %v521 = vrot.slane %v507, %v520
        %v522 = vcombine.low %v292, %v299
        %v523 = vcombine.high %v292, %v299
        %v525 = vunpack.c.l.s4 1983009808
        %v526 = vunpack.c.0.s8 %v525
        %v527 = vlaneseq
        %v528 = vshrl.u32 %v527, 7
        %v529 = vsub.s32 %v526, %v528
        %v530 = vrot.slane %v522, %v529
        %v532 = vunpack.c.l.s4 1983009808
        %v533 = vunpack.c.0.s8 %v532
        %v534 = vlaneseq
        %v535 = vshrl.u32 %v534, 7
        %v536 = vsub.s32 %v533, %v535
        %v537 = vrot.slane %v523, %v536
        %v538 = vcombine.low %v482, %v498
        %v539 = vcombine.high %v482, %v498
        %v541 = vunpack.c.l.s4 1934713408
        %v542 = vunpack.c.0.s8 %v541
        %v543 = vlaneseq
        %v544 = vshrl.u32 %v543, 7
        %v545 = vsub.s32 %v542, %v544
        %v546 = vrot.slane %v538, %v545
        %v548 = vunpack.c.l.s4 1934713408
        %v549 = vunpack.c.0.s8 %v548
        %v550 = vlaneseq
        %v551 = vshrl.u32 %v550, 7
        %v552 = vsub.s32 %v549, %v551
        %v553 = vrot.slane %v539, %v552
        %v554 = vcombine.low %v489, %v505
        %v555 = vcombine.high %v489, %v505
        %v557 = vunpack.c.l.s4 1934713408
        %v558 = vunpack.c.0.s8 %v557
        %v559 = vlaneseq
        %v560 = vshrl.u32 %v559, 7
        %v561 = vsub.s32 %v558, %v560
        %v562 = vrot.slane %v554, %v561
        %v564 = vunpack.c.l.s4 1934713408
        %v565 = vunpack.c.0.s8 %v564
        %v566 = vlaneseq
        %v567 = vshrl.u32 %v566, 7
        %v568 = vsub.s32 %v565, %v567
        %v569 = vrot.slane %v555, %v568
        %v570 = vcombine.low %v514, %v530
        %v571 = vcombine.high %v514, %v530
        %v573 = vunpack.c.l.s4 1934713408
        %v574 = vunpack.c.0.s8 %v573
        %v575 = vlaneseq
        %v576 = vshrl.u32 %v575, 7
        %v577 = vsub.s32 %v574, %v576
        %v578 = vrot.slane %v570, %v577
        %v580 = vunpack.c.l.s4 1934713408
        %v581 = vunpack.c.0.s8 %v580
        %v582 = vlaneseq
        %v583 = vshrl.u32 %v582, 7
        %v584 = vsub.s32 %v581, %v583
        %v585 = vrot.slane %v571, %v584
        %v586 = vcombine.low %v521, %v537
        %v587 = vcombine.high %v521, %v537
        %v589 = vunpack.c.l.s4 1934713408
        %v590 = vunpack.c.0.s8 %v589
        %v591 = vlaneseq
        %v592 = vshrl.u32 %v591, 7
        %v593 = vsub.s32 %v590, %v592
        %v594 = vrot.slane %v586, %v593
        %v596 = vunpack.c.l.s4 1934713408
        %v597 = vunpack.c.0.s8 %v596
        %v598 = vlaneseq
        %v599 = vshrl.u32 %v598, 7
        %v600 = vsub.s32 %v597, %v599
        %v601 = vrot.slane %v587, %v600
        %v602 = vcombine.low %v546, %v578
        %v603 = vcombine.high %v546, %v578
        %v604 = vcombine.low %v553, %v585
        %v605 = vcombine.high %v553, %v585
        %v606 = vcombine.low %v562, %v594
        %v607 = vcombine.high %v562, %v594
        %v608 = vcombine.low %v569, %v601
        %v609 = vcombine.high %v569, %v601
        %v610 = vcombine.low %v301, %v310
        %v611 = vcombine.high %v301, %v310
        %v613 = vunpack.c.l.s4 1983009808
        %v614 = vunpack.c.0.s8 %v613
        %v615 = vlaneseq
        %v616 = vshrl.u32 %v615, 7
        %v617 = vsub.s32 %v614, %v616
        %v618 = vrot.slane %v610, %v617
        %v620 = vunpack.c.l.s4 1983009808
        %v621 = vunpack.c.0.s8 %v620
        %v622 = vlaneseq
        %v623 = vshrl.u32 %v622, 7
        %v624 = vsub.s32 %v621, %v623
        %v625 = vrot.slane %v611, %v624
        %v626 = vcombine.low %v303, %v313
        %v627 = vcombine.high %v303, %v313
        %v629 = vunpack.c.l.s4 1983009808
        %v630 = vunpack.c.0.s8 %v629
        %v631 = vlaneseq
        %v632 = vshrl.u32 %v631, 7
        %v633 = vsub.s32 %v630, %v632
        %v634 = vrot.slane %v626, %v633
        %v636 = vunpack.c.l.s4 1983009808
        %v637 = vunpack.c.0.s8 %v636
        %v638 = vlaneseq
        %v639 = vshrl.u32 %v638, 7
        %v640 = vsub.s32 %v637, %v639
        %v641 = vrot.slane %v627, %v640
        %v642 = vcombine.low %v316, %v323
        %v643 = vcombine.high %v316, %v323
        %v645 = vunpack.c.l.s4 1983009808
        %v646 = vunpack.c.0.s8 %v645
        %v647 = vlaneseq
        %v648 = vshrl.u32 %v647, 7
        %v649 = vsub.s32 %v646, %v648
        %v650 = vrot.slane %v642, %v649
        %v652 = vunpack.c.l.s4 1983009808
        %v653 = vunpack.c.0.s8 %v652
        %v654 = vlaneseq
        %v655 = vshrl.u32 %v654, 7
        %v656 = vsub.s32 %v653, %v655
        %v657 = vrot.slane %v643, %v656
        %v658 = vcombine.low %v321, %v325
        %v659 = vcombine.high %v321, %v325
        %v661 = vunpack.c.l.s4 1983009808
        %v662 = vunpack.c.0.s8 %v661
        %v663 = vlaneseq
        %v664 = vshrl.u32 %v663, 7
        %v665 = vsub.s32 %v662, %v664
        %v666 = vrot.slane %v658, %v665
        %v668 = vunpack.c.l.s4 1983009808
        %v669 = vunpack.c.0.s8 %v668
        %v670 = vlaneseq
        %v671 = vshrl.u32 %v670, 7
        %v672 = vsub.s32 %v669, %v671
        %v673 = vrot.slane %v659, %v672
        %v674 = vcombine.low %v618, %v634
        %v675 = vcombine.high %v618, %v634
        %v677 = vunpack.c.l.s4 1934713408
        %v678 = vunpack.c.0.s8 %v677
        %v679 = vlaneseq
        %v680 = vshrl.u32 %v679, 7
        %v681 = vsub.s32 %v678, %v680
        %v682 = vrot.slane %v674, %v681
        %v684 = vunpack.c.l.s4 1934713408
        %v685 = vunpack.c.0.s8 %v684
        %v686 = vlaneseq
        %v687 = vshrl.u32 %v686, 7
        %v688 = vsub.s32 %v685, %v687
        %v689 = vrot.slane %v675, %v688
        %v690 = vcombine.low %v625, %v641
        %v691 = vcombine.high %v625, %v641
        %v693 = vunpack.c.l.s4 1934713408
        %v694 = vunpack.c.0.s8 %v693
        %v695 = vlaneseq
        %v696 = vshrl.u32 %v695, 7
        %v697 = vsub.s32 %v694, %v696
        %v698 = vrot.slane %v690, %v697
        %v700 = vunpack.c.l.s4 1934713408
        %v701 = vunpack.c.0.s8 %v700
        %v702 = vlaneseq
        %v703 = vshrl.u32 %v702, 7
        %v704 = vsub.s32 %v701, %v703
        %v705 = vrot.slane %v691, %v704
        %v706 = vcombine.low %v650, %v666
        %v707 = vcombine.high %v650, %v666
        %v709 = vunpack.c.l.s4 1934713408
        %v710 = vunpack.c.0.s8 %v709
        %v711 = vlaneseq
        %v712 = vshrl.u32 %v711, 7
        %v713 = vsub.s32 %v710, %v712
        %v714 = vrot.slane %v706, %v713
        %v716 = vunpack.c.l.s4 1934713408
        %v717 = vunpack.c.0.s8 %v716
        %v718 = vlaneseq
        %v719 = vshrl.u32 %v718, 7
        %v720 = vsub.s32 %v717, %v719
        %v721 = vrot.slane %v707, %v720
        %v722 = vcombine.low %v657, %v673
        %v723 = vcombine.high %v657, %v673
        %v725 = vunpack.c.l.s4 1934713408
        %v726 = vunpack.c.0.s8 %v725
        %v727 = vlaneseq
        %v728 = vshrl.u32 %v727, 7
        %v729 = vsub.s32 %v726, %v728
        %v730 = vrot.slane %v722, %v729
        %v732 = vunpack.c.l.s4 1934713408
        %v733 = vunpack.c.0.s8 %v732
        %v734 = vlaneseq
        %v735 = vshrl.u32 %v734, 7
        %v736 = vsub.s32 %v733, %v735
        %v737 = vrot.slane %v723, %v736
        %v738 = vcombine.low %v682, %v714
        %v739 = vcombine.high %v682, %v714
        %v740 = vcombine.low %v689, %v721
        %v741 = vcombine.high %v689, %v721
        %v742 = vcombine.low %v698, %v730
        %v743 = vcombine.high %v698, %v730
        %v744 = vcombine.low %v705, %v737
        %v745 = vcombine.high %v705, %v737
        %v746 = vcombine.low %v330, %v334
        %v747 = vcombine.high %v330, %v334
        %v749 = vunpack.c.l.s4 1983009808
        %v750 = vunpack.c.0.s8 %v749
        %v751 = vlaneseq
        %v752 = vshrl.u32 %v751, 7
        %v753 = vsub.s32 %v750, %v752
        %v754 = vrot.slane %v746, %v753
        %v756 = vunpack.c.l.s4 1983009808
        %v757 = vunpack.c.0.s8 %v756
        %v758 = vlaneseq
        %v759 = vshrl.u32 %v758, 7
        %v760 = vsub.s32 %v757, %v759
        %v761 = vrot.slane %v747, %v760
        %v762 = vcombine.high %v332, 0.0
        %v764 = vunpack.c.l.s4 1983009808
        %v765 = vunpack.c.0.s8 %v764
        %v766 = vlaneseq
        %v767 = vshrl.u32 %v766, 7
        %v768 = vsub.s32 %v765, %v767
        %v769 = vrot.slane %v332, %v768
        %v771 = vunpack.c.l.s4 1983009808
        %v772 = vunpack.c.0.s8 %v771
        %v773 = vlaneseq
        %v774 = vshrl.u32 %v773, 7
        %v775 = vsub.s32 %v772, %v774
        %v776 = vrot.slane %v762, %v775
        %v777 = vcombine.low %v754, %v769
        %v778 = vcombine.high %v754, %v769
        %v780 = vunpack.c.l.s4 1934713408
        %v781 = vunpack.c.0.s8 %v780
        %v782 = vlaneseq
        %v783 = vshrl.u32 %v782, 7
        %v784 = vsub.s32 %v781, %v783
        %v785 = vrot.slane %v777, %v784
        %v787 = vunpack.c.l.s4 1934713408
        %v788 = vunpack.c.0.s8 %v787
        %v789 = vlaneseq
        %v790 = vshrl.u32 %v789, 7
        %v791 = vsub.s32 %v788, %v790
        %v792 = vrot.slane %v778, %v791
        %v793 = vcombine.low %v761, %v776
        %v794 = vcombine.high %v761, %v776
        %v796 = vunpack.c.l.s4 1934713408
        %v797 = vunpack.c.0.s8 %v796
        %v798 = vlaneseq
        %v799 = vshrl.u32 %v798, 7
        %v800 = vsub.s32 %v797, %v799
        %v801 = vrot.slane %v793, %v800
        %v803 = vunpack.c.l.s4 1934713408
        %v804 = vunpack.c.0.s8 %v803
        %v805 = vlaneseq
        %v806 = vshrl.u32 %v805, 7
        %v807 = vsub.s32 %v804, %v806
        %v808 = vrot.slane %v794, %v807
        %v809 = vcombine.high %v785, 0.0
        %v810 = vcombine.high %v792, 0.0
        %v811 = vcombine.high %v801, 0.0
        %v812 = vcombine.high %v808, 0.0
        %817 = vrot.lane.b32.xlu0 %v467, 8
        %v818 = vpop.permute.xlu0 %817
        %819 = vrot.lane.b32.xlu0 %v603, 8
        %v820 = vpop.permute.xlu0 %819
        %821 = vrot.lane.b32.xlu0 %v739, 8
        %v822 = vpop.permute.xlu0 %821
        %823 = vrot.lane.b32.xlu0 %v809, 8
        %v824 = vpop.permute.xlu0 %823
        %833 = vrot.lane.b32.xlu0 %v468, 16
        %v834 = vpop.permute.xlu0 %833
        %835 = vrot.lane.b32.xlu0 %v604, 16
        %v836 = vpop.permute.xlu0 %835
        %837 = vrot.lane.b32.xlu0 %v740, 16
        %v838 = vpop.permute.xlu0 %837
        %839 = vrot.lane.b32.xlu0 %v792, 16
        %v840 = vpop.permute.xlu0 %839
        %849 = vrot.lane.b32.xlu0 %v469, 24
        %v850 = vpop.permute.xlu0 %849
        %851 = vrot.lane.b32.xlu0 %v605, 24
        %v852 = vpop.permute.xlu0 %851
        %853 = vrot.lane.b32.xlu0 %v741, 24
        %v854 = vpop.permute.xlu0 %853
        %855 = vrot.lane.b32.xlu0 %v810, 24
        %v856 = vpop.permute.xlu0 %855
        %865 = vrot.lane.b32.xlu0 %v470, 32
        %v866 = vpop.permute.xlu0 %865
        %867 = vrot.lane.b32.xlu0 %v606, 32
        %v868 = vpop.permute.xlu0 %867
        %869 = vrot.lane.b32.xlu0 %v742, 32
        %v870 = vpop.permute.xlu0 %869
        %871 = vrot.lane.b32.xlu0 %v801, 32
        %v872 = vpop.permute.xlu0 %871
        %881 = vrot.lane.b32.xlu0 %v471, 40
        %v882 = vpop.permute.xlu0 %881
        %883 = vrot.lane.b32.xlu0 %v607, 40
        %v884 = vpop.permute.xlu0 %883
        %885 = vrot.lane.b32.xlu0 %v743, 40
        %v886 = vpop.permute.xlu0 %885
        %887 = vrot.lane.b32.xlu0 %v811, 40
        %v888 = vpop.permute.xlu0 %887
        %897 = vrot.lane.b32.xlu0 %v472, 48
        %v898 = vpop.permute.xlu0 %897
        %899 = vrot.lane.b32.xlu0 %v608, 48
        %v900 = vpop.permute.xlu0 %899
        %901 = vrot.lane.b32.xlu0 %v744, 48
        %v902 = vpop.permute.xlu0 %901
        %903 = vrot.lane.b32.xlu0 %v808, 48
        %v904 = vpop.permute.xlu0 %903
        %913 = vrot.lane.b32.xlu0 %v473, 56
        %v914 = vpop.permute.xlu0 %913
        %915 = vrot.lane.b32.xlu0 %v609, 56
        %v916 = vpop.permute.xlu0 %915
        %917 = vrot.lane.b32.xlu0 %v745, 56
        %v918 = vpop.permute.xlu0 %917
        %919 = vrot.lane.b32.xlu0 %v812, 56
        %v920 = vpop.permute.xlu0 %919
        %vm925 = vcmask 64512
        %v926 = vsel %vm925, %v466, %v818
        %v927 = vsel %vm925, %v602, %v820
        %v928 = vsel %vm925, %v738, %v822
        %v929 = vsel %vm925, %v785, %v824
        %vm930 = vcmask 130048
        %v931 = vsel %vm930, %v926, %v834
        %v932 = vsel %vm930, %v927, %v836
        %v933 = vsel %vm930, %v928, %v838
        %v934 = vsel %vm930, %v929, %v840
        %vm935 = vcmask 195584
        %v936 = vsel %vm935, %v931, %v850
        %v937 = vsel %vm935, %v932, %v852
        %v938 = vsel %vm935, %v933, %v854
        %v939 = vsel %vm935, %v934, %v856
        %vm940 = vcmask 261120
        %v941 = vsel %vm940, %v936, %v866
        %v942 = vsel %vm940, %v937, %v868
        %v943 = vsel %vm940, %v938, %v870
        %v944 = vsel %vm940, %v939, %v872
        %vm945 = vcmask 326656
        %v946 = vsel %vm945, %v941, %v882
        %v947 = vsel %vm945, %v942, %v884
        %v948 = vsel %vm945, %v943, %v886
        %v949 = vsel %vm945, %v944, %v888
        %vm950 = vcmask 392192
        %v951 = vsel %vm950, %v946, %v898
        %v952 = vsel %vm950, %v947, %v900
        %v953 = vsel %vm950, %v948, %v902
        %v954 = vsel %vm950, %v949, %v904
        %vm955 = vcmask 457728
        %v956 = vsel %vm955, %v951, %v914
        %v957 = vsel %vm955, %v952, %v916
        %v958 = vsel %vm955, %v953, %v918
        %v959 = vsel %vm955, %v954, %v920
        %v960 = vld [vmem:[#allocation5] sm:$0xff]
        %vm961 = vcmask 220160
        %v963 = vsel %vm961, %v960, 0
        %vm965 = vcmask 1042432
        %v967 = vsel %vm965, %v959, 0
        %969 = vmatprep.subr.mxu0 0.0
        %970 = vmatpush1.msra.mxu0 0.0
        %971 = vmatprep.subr.mxu0 0.0
        %972 = vmatpush1.msra.mxu0 0.0
        %973 = vmatprep.subr.mxu0 0.0
        %974 = vmatpush1.msra.mxu0 0.0
        %975 = vmatprep.subr.mxu0 0.0
        %976 = vmatpush1.msra.mxu0 0.0
        %977 = vmatprep.subr.mxu0 0.0
        %978 = vmatpush1.msra.mxu0 0.0
        %979 = vmatprep.subr.mxu0 0.0
        %980 = vmatpush1.msra.mxu0 0.0
        %981 = vmatprep.subr.mxu0 0.0
        %982 = vmatpush1.msra.mxu0 0.0
        %983 = vmatprep.subr.mxu0 0.0
        %984 = vmatpush1.msra.mxu0 0.0
        %985 = vmatprep.subr.mxu0 0.0
        %986 = vmatpush1.msra.mxu0 0.0
        %987 = vmatprep.subr.mxu0 0.0
        %988 = vmatpush1.msra.mxu0 0.0
        %989 = vmatprep.subr.mxu0 0.0
        %990 = vmatpush1.msra.mxu0 0.0
        %991 = vmatprep.subr.mxu0 0.0
        %992 = vmatpush1.msra.mxu0 0.0
        %993 = vmatprep.subr.mxu0 0.0
        %994 = vmatpush1.msra.mxu0 %v967
        %995 = vmatprep.subr.mxu0 0.0
        %996 = vmatpush1.msra.mxu0 %v958
        %997 = vmatprep.subr.mxu0 0.0
        %998 = vmatpush1.msra.mxu0 %v957
        %999 = vmatprep.subr.mxu0 0.0
        %1000 = vmatpush1.msra.mxu0 %v956
        %1001 = vmatprep.subr.mxu0 0.0
        %1002 = vmatpush2.msra.mxu0 0.0
        %1003 = vmatprep.subr.mxu0 0.0
        %1004 = vmatpush2.msra.mxu0 0.0
        %1005 = vmatprep.subr.mxu0 0.0
        %1006 = vmatpush2.msra.mxu0 0.0
        %1007 = vmatprep.subr.mxu0 0.0
        %1008 = vmatpush2.msra.mxu0 0.0
        %1009 = vmatprep.subr.mxu0 0.0
        %1010 = vmatpush2.msra.mxu0 0.0
        %1011 = vmatprep.subr.mxu0 0.0
        %1012 = vmatpush2.msra.mxu0 0.0
        %1013 = vmatprep.subr.mxu0 0.0
        %1014 = vmatpush2.msra.mxu0 0.0
        %1015 = vmatprep.subr.mxu0 0.0
        %1016 = vmatpush2.msra.mxu0 0.0
        %1017 = vmatprep.subr.mxu0 0.0
        %1018 = vmatpush2.msra.mxu0 0.0
        %1019 = vmatprep.subr.mxu0 0.0
        %1020 = vmatpush2.msra.mxu0 0.0
        %1021 = vmatprep.subr.mxu0 0.0
        %1022 = vmatpush2.msra.mxu0 0.0
        %1023 = vmatprep.subr.mxu0 0.0
        %1024 = vmatpush2.msra.mxu0 0.0
        %1025 = vmatprep.subr.mxu0 0.0
        %1026 = vmatpush2.msra.mxu0 0.0
        %1027 = vmatprep.subr.mxu0 0.0
        %1028 = vmatpush2.msra.mxu0 0.0
        %1029 = vmatprep.subr.mxu0 0.0
        %1030 = vmatpush2.msra.mxu0 0.0
        %1031 = vmatprep.subr.mxu0 0.0
        %1032 = vmatpush2.msra.mxu0 0.0
        %1033 = vmatprep.mubr.f32.mxu0 0.0
        %1034 = vmatmul.mubr.f32.gmra.mxu0 %v963
        %v1035 = vpop.f32.mrf.mxu0
        %v1036 = vadd.f32 0.0, %v1035
        %v1037 = vpop.f32.mrf.mxu0
        %1038 = vdwg.mxu0
        %vm1039 = vcmask 523264
        %1040 = vst.msk [vmem:[%s205] sm:$0xff] %vm1039, %v1036
        %v1041 = vmax.f32 %v1036, 0.0
        %1042 = vst.msk [vmem:[%s212] sm:$0xff] %vm1039, %v1041
        %s1043 = sand.u32 %s80, 1
        %s1044 = scalar_lea.sflag [#allocation4], %s1043
        %s1045 = sand.u32 %s80, 1
        %s1046 = smul.addr %s1045, 8
        %s1047 = scalar_lea.vmem [#allocation7], %s1046
        %s1048 = sand.u32 %s106, 1
        %s1049 = scalar_lea.sflag [#allocation9], %s1048
        %s1050 = sand.u32 %s106, 1
        %s1051 = smul.addr %s1050, 8
        %s1052 = scalar_lea.vmem [#allocation8], %s1051
        // Predicated region
        $region37: #{tpu_custom_call.1} parent=27 // pred_check
          %p1053 = pneg %p90
        $region38: #{tpu_custom_call.1} parent=27 // pred_check_branch
          %1055 = sbr.rel (%p1053) target = $region40
        $region39: #{tpu_custom_call.1} parent=27 // pred_region
          %s1057 = ssub.s32 128, 128
          %1058 = vsyncadd %s1044, %s1057
          %s1059 = smul.addr %s25, 128
          %s1060 = scalar_lea.hbm %s2, %s1059
          %s1062 = sshll.u32 %s1047, 4
          %s1063 = int_to_ptr.vmem [resolvable:$true] %s1062
          %1065 = dma.vmem_to_hbm [thread:$0]  %s1063, 128, %s1060, %s1044
        $region40: #{tpu_custom_call.1} parent=27 // pred_fallthru
          _
        // Predicated region
        $region41: #{tpu_custom_call.1} parent=27 // pred_check
          %p1066 = pneg %p116
        $region42: #{tpu_custom_call.1} parent=27 // pred_check_branch
          %1068 = sbr.rel (%p1066) target = $region44
        $region43: #{tpu_custom_call.1} parent=27 // pred_region
          %s1070 = ssub.s32 128, 128
          %1071 = vsyncadd %s1049, %s1070
          %s1072 = smul.addr %s25, 128
          %s1073 = scalar_lea.hbm %s3, %s1072
          %s1075 = sshll.u32 %s1052, 4
          %s1076 = int_to_ptr.vmem [resolvable:$true] %s1075
          %1078 = dma.vmem_to_hbm [thread:$0]  %s1076, 128, %s1073, %s1049
        $region44: #{tpu_custom_call.1} parent=27 // pred_fallthru
          _
      $region28: #{tpu_custom_call.1} parent=5 // pred_fallthru
        _
      %p1079 = scmp.le.s32.totalorder 2, %s20
      // Predicated region
      $region45: #{tpu_custom_call.1} parent=5 // pred_check
        %p1080 = pneg %p1079
      $region46: #{tpu_custom_call.1} parent=5 // pred_check_branch
        %1082 = sbr.rel (%p1080) target = $region48
      $region47: #{tpu_custom_call.1} parent=5 // pred_region
        %s1083 = ssub.s32 %s20, 2
        // Predicated region
        $region49: #{tpu_custom_call.1} parent=47 // pred_check
          %p1084 = pneg %p96
        $region50: #{tpu_custom_call.1} parent=47 // pred_check_branch
          %1086 = sbr.rel (%p1084) target = $region52
        $region51: #{tpu_custom_call.1} parent=47 // pred_region
          %s1087 = sand.u32 %s81, 1
          %s1088 = scalar_lea.sflag [#allocation4], %s1087
          %s1089 = sand.u32 %s81, 1
          %s1090 = smul.addr %s1089, 8
          %s1091 = scalar_lea.vmem [#allocation7], %s1090
          %1092 = dma.done %s1088, 128
        $region52: #{tpu_custom_call.1} parent=47 // pred_fallthru
          _
        // Predicated region
        $region53: #{tpu_custom_call.1} parent=47 // pred_check
          %p1093 = pneg %p122
        $region54: #{tpu_custom_call.1} parent=47 // pred_check_branch
          %1095 = sbr.rel (%p1093) target = $region56
        $region55: #{tpu_custom_call.1} parent=47 // pred_region
          %s1096 = sand.u32 %s107, 1
          %s1097 = scalar_lea.sflag [#allocation9], %s1096
          %s1098 = sand.u32 %s107, 1
          %s1099 = smul.addr %s1098, 8
          %s1100 = scalar_lea.vmem [#allocation8], %s1099
          %1101 = dma.done %s1097, 128
        $region56: #{tpu_custom_call.1} parent=47 // pred_fallthru
          _
      $region48: #{tpu_custom_call.1} parent=5 // pred_fallthru
        _
    $region6: #{tpu_custom_call.1} parent=1 // loop_footer
      %s24 = sadd.s32 1, %s20
    $region7: #{tpu_custom_call.1} parent=1 // loop_footer_branch
      %19 = sbr.rel target = $region3
    $region8: #{tpu_custom_call.1} parent=1 // loop_exit
      _
    %1102 = vsyncpa [#allocation3], 1
    %s1103 = scalar_lea.sflag [#allocation3], 1
    %1104 = vsyncpa %s1103, 1
    %1105 = vsyncpa [#allocation6], 1
    %1106 = vsyncpa [#allocation4], 1
    %s1107 = scalar_lea.sflag [#allocation4], 1
    %1108 = vsyncpa %s1107, 1
    %1109 = vsyncpa [#allocation9], 1
    %s1110 = scalar_lea.sflag [#allocation9], 1
    %1111 = vsyncpa %s1110, 1

</llo_original>
